<compile_context>
chip_gen: v6e
topology: v6e:2x2x1
jax: 0.10.0
libtpu: 0.0.40
codegen_flags: <defaults>
</compile_context>

<pallas_src>
import math

import jax
import jax.numpy as jnp
from jax.experimental import pallas as pl
from jax.experimental.pallas import tpu as pltpu

_INV_SQRT2 = 1.0 / math.sqrt(2.0)


def _round_up(a, m):
    return ((a + m - 1) // m) * m


def _gelu(y):
    # Exact erf-based GELU (matches the reference gelu()).
    return y * 0.5 * (1.0 + jax.lax.erf(y * _INV_SQRT2))


def _vmem_capacity_bytes():
    try:
        return int(pltpu.get_tpu_info().vmem_capacity_bytes)
    except Exception:
        return 64 * 1024 * 1024  # v7x per-core VMEM (smallest across gens)


def _balanced_tile(n, cap):
    """cap must be a multiple of 8.  Returns (tile_n, n_tiles, n_pad)."""
    cap = max(8, min(cap, _round_up(n, 8)))
    n_tiles = -(-n // cap)
    tile_n = _round_up(-(-n // n_tiles), 8)
    return tile_n, n_tiles, n_tiles * tile_n


# ---------------------------------------------------------------------------
# Path A: W fully VMEM-resident, batch-tiled grid, everything fused.
# ---------------------------------------------------------------------------
def _fe_resident_kernel(x_ref, w_ref, b_ref, o_ref):
    # x_ref: (TILE_N, D_in)   w_ref: (D_in, D_out_p)   b_ref: (1, D_out_p)
    y = jnp.dot(x_ref[...], w_ref[...], preferred_element_type=jnp.float32)
    y = y + b_ref[...]
    y = _gelu(y)
    # Dropout(p=0.1) in eval mode == identity.
    # F.normalize(dim=1): 1/max(||y||,1e-12) == rsqrt(max(sum(y^2),1e-24)).
    sq = jnp.sum(y * y, axis=1, keepdims=True)
    inv = jax.lax.rsqrt(jnp.maximum(sq, 1e-24))
    o_ref[...] = (y * inv).astype(o_ref.dtype)


def _call_resident(x_p, w_fused, b_fused, out_dtype, tile_n, n_tiles,
                   d_in, d_out_p, use_buffered, xo_depth, vmem_cap):
    in_bytes = w_fused.dtype.itemsize
    out_bytes = jnp.dtype(out_dtype).itemsize
    w_bufs = 1 if use_buffered else 2
    depth = xo_depth if use_buffered else 2
    need = (w_bufs * d_in * d_out_p * in_bytes
            + w_bufs * d_out_p * 4
            + depth * tile_n * d_in * in_bytes
            + depth * tile_n * d_out_p * out_bytes)
    vmem_limit = int(min(max(need * 1.25 + (4 << 20), 16 << 20),
                         0.9 * vmem_cap))

    x_kwargs, o_kwargs, w_kwargs, b_kwargs = {}, {}, {}, {}
    if use_buffered:
        # Constant index_map -> never re-DMAs; one buffer is enough.
        w_kwargs = dict(pipeline_mode=pl.Buffered(buffer_count=1))
        b_kwargs = dict(pipeline_mode=pl.Buffered(buffer_count=1))
        if depth != 2:
            x_kwargs = dict(pipeline_mode=pl.Buffered(buffer_count=depth))
            o_kwargs = dict(pipeline_mode=pl.Buffered(buffer_count=depth))

    n_pad = x_p.shape[0]
    return pl.pallas_call(
        _fe_resident_kernel,
        out_shape=jax.ShapeDtypeStruct((n_pad, d_out_p), out_dtype),
        grid_spec=pl.GridSpec(
            grid=(n_tiles,),
            in_specs=[
                pl.BlockSpec((tile_n, d_in), lambda i: (i, 0), **x_kwargs),
                pl.BlockSpec((d_in, d_out_p), lambda i: (0, 0), **w_kwargs),
                pl.BlockSpec((1, d_out_p), lambda i: (0, 0), **b_kwargs),
            ],
            out_specs=pl.BlockSpec((tile_n, d_out_p), lambda i: (i, 0),
                                   **o_kwargs),
        ),
        compiler_params=pltpu.CompilerParams(
            dimension_semantics=("parallel",),      # shard batch tiles (v7x)
            vmem_limit_bytes=vmem_limit,
        ),
        cost_estimate=pl.CostEstimate(
            flops=2 * n_pad * d_in * d_out_p,
            transcendentals=2 * n_pad * d_out_p,
            bytes_accessed=(n_pad * d_in * in_bytes
                            + d_in * d_out_p * in_bytes
                            + n_pad * d_out_p * out_bytes),
        ),
    )(x_p, w_fused, b_fused)


# ---------------------------------------------------------------------------
# Path B (W too large for VMEM residency, e.g. on v7x): d_out tiled.
# Pass 1 computes gelu(x@W+b) tiles and accumulates the per-row sum of
# squares flash-style across d_out tiles; pass 2 rescales.
# ---------------------------------------------------------------------------
def _fe_dout_tiled_pass1_kernel(x_ref, w_ref, b_ref, y_ref, ss_ref):
    j = pl.program_id(1)

    @pl.when(j == 0)
    def _():
        ss_ref[...] = jnp.zeros_like(ss_ref)

    y = jnp.dot(x_ref[...], w_ref[...], preferred_element_type=jnp.float32)
    y = y + b_ref[...]
    y = _gelu(y)
    ss_ref[...] += jnp.sum(y * y, axis=1, keepdims=True)
    y_ref[...] = y.astype(y_ref.dtype)


def _fe_dout_tiled_pass2_kernel(y_ref, ss_ref, o_ref):
    inv = jax.lax.rsqrt(jnp.maximum(ss_ref[...], 1e-24))
    o_ref[...] = (y_ref[...] * inv).astype(o_ref.dtype)


# ---------------------------------------------------------------------------
# Wrapper
# ---------------------------------------------------------------------------
def feature_extractor(x, w, b, gamma, beta, running_mean, running_var,
                      eps=1e-5, max_tile_n=512, use_bf16_matmul=False,
                      force_dout_tiling=False, max_tile_dout=512):
    """x: (N, D_in) f32.  w: (D_out, D_in) PyTorch layout.  Returns (N, D_out)."""
    n, d_in = x.shape
    d_out = w.shape[0]
    out_dtype = x.dtype

    # ---- Fold BatchNorm (eval) into the linear layer (one-time XLA ops) ----
    inv_std = 1.0 / jnp.sqrt(running_var + eps)
    scale = gamma * inv_std                    # (D_out,)
    shift = beta - running_mean * scale        # (D_out,)
    w_fused = (w * scale[:, None]).T           # (D_in, D_out) = W^T * scale
    b_fused = (b * scale + shift).reshape(1, d_out)

    # ---- Lane-align D_out (zero columns don't affect the row L2 norm) ------
    d_out_p = _round_up(d_out, 128)
    if d_out_p != d_out:
        w_fused = jnp.pad(w_fused, ((0, 0), (0, d_out_p - d_out)))
        b_fused = jnp.pad(b_fused, ((0, 0), (0, d_out_p - d_out)))

    # ---- Optional bf16 MXU path (f32 accumulation kept inside the kernel) --
    if use_bf16_matmul:
        w_fused = w_fused.astype(jnp.bfloat16)
        x = x.astype(jnp.bfloat16)
    in_bytes = w_fused.dtype.itemsize
    out_bytes = jnp.dtype(out_dtype).itemsize

    # ---- Per-TensorCore VMEM budget (W is replicated per core on v7x) ------
    cap = _vmem_capacity_bytes()
    budget = int(0.75 * cap)
    slack = 2 << 20

    w_resident_bytes = d_in * d_out_p * in_bytes          # single-buffered W
    per_row2 = 2 * (d_in * in_bytes + d_out_p * out_bytes)
    use_resident = (not force_dout_tiling) and (
        w_resident_bytes + slack + 8 * per_row2 <= budget)

    if use_resident:
        room = budget - w_resident_bytes - slack
        tile_cap = min(max_tile_n, max(8, (room // per_row2) // 8 * 8))
        tile_n, n_tiles, n_pad = _balanced_tile(n, tile_cap)
        x_p = jnp.pad(x, ((0, n_pad - n), (0, 0))) if n_pad != n else x

        # Deeper x/out buffering only helps when the per-tile matmul is small
        # (HBM-bound) and there are enough grid steps to pipeline.
        depth3_bytes = 3 * tile_n * (d_in * in_bytes + d_out_p * out_bytes)
        xo_depth = 3 if (d_in <= 256 and n_tiles >= 3 and
                         w_resident_bytes + slack + depth3_bytes <= budget) else 2
        try:
            out = _call_resident(x_p, w_fused, b_fused, out_dtype, tile_n,
                                 n_tiles, d_in, d_out_p, True, xo_depth, cap)
            out = jax.block_until_ready(out)
        except Exception:
            # pipeline_mode=pl.Buffered(...) unsupported on this jax version:
            # fall back to default double-buffering (correctness unchanged).
            out = _call_resident(x_p, w_fused, b_fused, out_dtype, tile_n,
                                 n_tiles, d_in, d_out_p, False, 2, cap)
        return out[:n, :d_out]

    # ---------------- Path B: tile d_out ------------------------------------
    tile_dout = min(_round_up(max_tile_dout, 128), d_out_p)
    while tile_dout > 128 and (2 * d_in * tile_dout * in_bytes + slack
                               + 16 * (d_in * in_bytes + tile_dout * out_bytes)
                               ) > budget:
        tile_dout -= 128
    d_out_pp = _round_up(d_out_p, tile_dout)
    if d_out_pp != d_out_p:
        w_fused = jnp.pad(w_fused, ((0, 0), (0, d_out_pp - d_out_p)))
        b_fused = jnp.pad(b_fused, ((0, 0), (0, d_out_pp - d_out_p)))
    d_tiles = d_out_pp // tile_dout

    per_row = 2 * (d_in * in_bytes + tile_dout * out_bytes)
    room = budget - 2 * d_in * tile_dout * in_bytes - slack
    tile_cap = min(max_tile_n, max(8, (room // per_row) // 8 * 8))
    tile_n, n_tiles, n_pad = _balanced_tile(n, tile_cap)
    x_p = jnp.pad(x, ((0, n_pad - n), (0, 0))) if n_pad != n else x

    need1 = (2 * tile_n * d_in * in_bytes + 2 * d_in * tile_dout * in_bytes
             + 2 * tile_dout * 4 + 2 * tile_n * tile_dout * 4 + 2 * tile_n * 4)
    vmem1 = int(min(max(need1 * 1.25 + (4 << 20), 16 << 20), 0.9 * cap))

    y_full, ss = pl.pallas_call(
        _fe_dout_tiled_pass1_kernel,
        out_shape=(jax.ShapeDtypeStruct((n_pad, d_out_pp), jnp.float32),
                   jax.ShapeDtypeStruct((n_pad, 1), jnp.float32)),
        grid_spec=pl.GridSpec(
            grid=(n_tiles, d_tiles),
            in_specs=[
                pl.BlockSpec((tile_n, d_in), lambda i, j: (i, 0)),
                pl.BlockSpec((d_in, tile_dout), lambda i, j: (0, j)),
                pl.BlockSpec((1, tile_dout), lambda i, j: (0, j)),
            ],
            out_specs=[
                pl.BlockSpec((tile_n, tile_dout), lambda i, j: (i, j)),
                pl.BlockSpec((tile_n, 1), lambda i, j: (i, 0)),  # row sumsq acc
            ],
        ),
        compiler_params=pltpu.CompilerParams(
            dimension_semantics=("parallel", "arbitrary"),
            vmem_limit_bytes=vmem1,
        ),
        cost_estimate=pl.CostEstimate(
            flops=2 * n_pad * d_in * d_out_pp,
            transcendentals=2 * n_pad * d_out_pp,
            bytes_accessed=(n_pad * d_in * in_bytes * d_tiles
                            + d_in * d_out_pp * in_bytes
                            + n_pad * d_out_pp * 4),
        ),
    )(x_p, w_fused, b_fused)

    need2 = 6 * tile_n * tile_dout * 4
    vmem2 = int(min(max(need2 * 1.25 + (4 << 20), 16 << 20), 0.9 * cap))
    out = pl.pallas_call(
        _fe_dout_tiled_pass2_kernel,
        out_shape=jax.ShapeDtypeStruct((n_pad, d_out_pp), out_dtype),
        grid_spec=pl.GridSpec(
            grid=(n_tiles, d_tiles),
            in_specs=[
                pl.BlockSpec((tile_n, tile_dout), lambda i, j: (i, j)),
                pl.BlockSpec((tile_n, 1), lambda i, j: (i, 0)),
            ],
            out_specs=pl.BlockSpec((tile_n, tile_dout), lambda i, j: (i, j)),
        ),
        compiler_params=pltpu.CompilerParams(
            dimension_semantics=("parallel", "parallel"),
            vmem_limit_bytes=vmem2,
        ),
    )(y_full, ss)

    return out[:n, :d_out]


# ---------------------------------------------------------------------------
# Reference + demo
# ---------------------------------------------------------------------------
def _reference(x, w, b, gamma, beta, running_mean, running_var, eps=1e-5):
    y = x @ w.T + b
    y = (y - running_mean) / jnp.sqrt(running_var + eps) * gamma + beta
    y = y * 0.5 * (1.0 + jax.lax.erf(y / jnp.sqrt(2.0)))
    norm = jnp.maximum(jnp.linalg.norm(y, axis=1, keepdims=True), 1e-12)
    return y / norm


def _make_params(key, n, d_in, d_out):
    k_x, k_w, k_b, k_m, k_v = jax.random.split(key, 5)
    x = jax.random.normal(k_x, (n, d_in), dtype=jnp.float32)
    bound = 1.0 / math.sqrt(d_in)
    w = jax.random.uniform(k_w, (d_out, d_in), minval=-bound, maxval=bound,
                           dtype=jnp.float32)
    b = jax.random.uniform(k_b, (d_out,), minval=-bound, maxval=bound,
                           dtype=jnp.float32)
    gamma = jnp.ones((d_out,), jnp.float32)
    beta = jnp.zeros((d_out,), jnp.float32)
    running_mean = 0.1 * jax.random.normal(k_m, (d_out,), dtype=jnp.float32)
    running_var = 1.0 + 0.1 * jax.random.uniform(k_v, (d_out,),
                                                 dtype=jnp.float32)
    return x, w, b, gamma, beta, running_mean, running_var


if __name__ == "__main__":
    key = jax.random.PRNGKey(0)
    k1, k2, _ = jax.random.split(key, 3)

    # 1) Small shapes through the fused resident-W path.
    N, D_IN, D_OUT = 8, 32, 128
    args = _make_params(k1, N, D_IN, D_OUT)
    out = jax.block_until_ready(feature_extractor(*args))
    ref = _reference(*args)
    assert out.shape == (N, D_OUT)
    assert jnp.allclose(out, ref, atol=1e-4, rtol=1e-4), "resident path mismatch"

    # 2) Odd batch + forced d_out-tiled path (exercises batch padding and the
    #    flash-style sum-of-squares accumulation used when W can't be resident).
    N2, D_IN2, D_OUT2 = 23, 64, 384
    args2 = _make_params(k2, N2, D_IN2, D_OUT2)
    out2 = jax.block_until_ready(
        feature_extractor(*args2, force_dout_tiling=True, max_tile_dout=128))
    ref2 = _reference(*args2)
    assert out2.shape == (N2, D_OUT2)
    assert jnp.allclose(out2, ref2, atol=1e-4, rtol=1e-4), "d_out-tiled mismatch"

    # 3) Opt-in bf16 MXU path (v6e/v7x), f32 accumulation, looser tolerance.
    out3 = jax.block_until_ready(feature_extractor(*args, use_bf16_matmul=True))
    assert out3.shape == (N, D_OUT)
    assert float(jnp.max(jnp.abs(out3 - ref))) < 5e-2, "bf16 path mismatch"

    print("KERNEL_OK")
</pallas_src>

<mosaic_0001>
module attributes {stable_mosaic.version = 11 : i64} {
  func.func @_fe_resident_kernel(%arg0: i32, %arg1: memref<8x32xf32, #tpu.memory_space<vmem>>, %arg2: memref<32x128xf32, #tpu.memory_space<vmem>>, %arg3: memref<1x128xf32, #tpu.memory_space<vmem>>, %arg4: memref<8x128xf32, #tpu.memory_space<vmem>>) attributes {dimension_semantics = [#tpu.dimension_semantics<parallel>], iteration_bounds = array<i64: 1>, scalar_prefetch = 0 : i64, scratch_operands = 0 : i64, tpu.core_type = #tpu.core_type<tc>, window_params = [{transform_indices = @transform_0, window_bounds = array<i64: 8, 32>}, {pipeline_mode = #tpu.pipeline_mode<synchronous>, transform_indices = @transform_1, window_bounds = array<i64: 32, 128>}, {pipeline_mode = #tpu.pipeline_mode<synchronous>, transform_indices = @transform_2, window_bounds = array<i64: 1, 128>}, {transform_indices = @transform_3, window_bounds = array<i64: 8, 128>}]} {
    %c0 = arith.constant 0 : index
    %c0_0 = arith.constant 0 : index
    %0 = vector.load %arg1[%c0, %c0_0] : memref<8x32xf32, #tpu.memory_space<vmem>>, vector<8x32xf32>
    %c0_1 = arith.constant 0 : index
    %c0_2 = arith.constant 0 : index
    %1 = vector.load %arg2[%c0_1, %c0_2] : memref<32x128xf32, #tpu.memory_space<vmem>>, vector<32x128xf32>
    %cst = arith.constant dense<0.000000e+00> : vector<8x128xf32>
    %2 = tpu.matmul %0, %1, %cst {dimension_numbers = #tpu.dot_dimension_numbers<[1], [0], [0], [1], [0, 0, 1, 1], [], []>} : vector<8x32xf32>, vector<32x128xf32>, vector<8x128xf32> -> vector<8x128xf32>
    %c0_3 = arith.constant 0 : index
    %c0_4 = arith.constant 0 : index
    %3 = vector.load %arg3[%c0_3, %c0_4] : memref<1x128xf32, #tpu.memory_space<vmem>>, vector<1x128xf32>
    %4 = vector.broadcast %3 : vector<1x128xf32> to vector<8x128xf32>
    %5 = arith.addf %2, %4 : vector<8x128xf32>
    %cst_5 = arith.constant 5.000000e-01 : f32
    %6 = vector.broadcast %cst_5 : f32 to vector<8x128xf32>
    %7 = arith.mulf %5, %6 : vector<8x128xf32>
    %cst_6 = arith.constant 0.707106769 : f32
    %8 = vector.broadcast %cst_6 : f32 to vector<8x128xf32>
    %9 = arith.mulf %5, %8 : vector<8x128xf32>
    %10 = math.erf %9 : vector<8x128xf32>
    %cst_7 = arith.constant 1.000000e+00 : f32
    %11 = vector.broadcast %cst_7 : f32 to vector<8x128xf32>
    %12 = arith.addf %11, %10 : vector<8x128xf32>
    %13 = arith.mulf %7, %12 : vector<8x128xf32>
    %14 = arith.mulf %13, %13 : vector<8x128xf32>
    %cst_8 = arith.constant dense<0.000000e+00> : vector<8xf32>
    %15 = vector.multi_reduction <add>, %14, %cst_8 [1] : vector<8x128xf32> to vector<8xf32>
    %16 = vector.shape_cast %15 : vector<8xf32> to vector<8x1xf32>
    %cst_9 = arith.constant 1.000000e-24 : f32
    %17 = vector.broadcast %cst_9 : f32 to vector<8x1xf32>
    %18 = arith.maximumf %16, %17 : vector<8x1xf32>
    %19 = math.rsqrt %18 : vector<8x1xf32>
    %20 = vector.broadcast %19 : vector<8x1xf32> to vector<8x128xf32>
    %21 = arith.mulf %13, %20 : vector<8x128xf32>
    %c0_10 = arith.constant 0 : index
    %c0_11 = arith.constant 0 : index
    %22 = vector.load %arg4[%c0_10, %c0_11] : memref<8x128xf32, #tpu.memory_space<vmem>>, vector<8x128xf32>
    tpu.vector_store %arg4[%c0_10, %c0_11], %21 {strides = array<i32>} : memref<8x128xf32, #tpu.memory_space<vmem>>, vector<8x128xf32>,
    return
  }
  func.func @transform_0(%arg0: i32) -> (i32, i32) {
    %c0_i32 = arith.constant 0 : i32
    %c0_i32_0 = arith.constant 0 : i32
    return %arg0, %c0_i32 : i32, i32
  }
  func.func @transform_1(%arg0: i32) -> (i32, i32) {
    %c0_i32 = arith.constant 0 : i32
    %c0_i32_0 = arith.constant 0 : i32
    %c0_i32_1 = arith.constant 0 : i32
    return %c0_i32, %c0_i32_0 : i32, i32
  }
  func.func @transform_2(%arg0: i32) -> (i32, i32) {
    %c0_i32 = arith.constant 0 : i32
    %c0_i32_0 = arith.constant 0 : i32
    %c0_i32_1 = arith.constant 0 : i32
    return %c0_i32, %c0_i32_0 : i32, i32
  }
  func.func @transform_3(%arg0: i32) -> (i32, i32) {
    %c0_i32 = arith.constant 0 : i32
    %c0_i32_0 = arith.constant 0 : i32
    return %arg0, %c0_i32 : i32, i32
  }
}

module attributes {stable_mosaic.version = 11 : i64} {
  func.func @_fe_resident_kernel(%arg0: i32, %arg1: memref<8x32xf32, #tpu.memory_space<vmem>>, %arg2: memref<32x128xf32, #tpu.memory_space<vmem>>, %arg3: memref<1x128xf32, #tpu.memory_space<vmem>>, %arg4: memref<8x128xf32, #tpu.memory_space<vmem>>) attributes {dimension_semantics = [#tpu.dimension_semantics<parallel>], iteration_bounds = array<i64: 1>, scalar_prefetch = 0 : i64, scratch_operands = 0 : i64, tpu.core_type = #tpu.core_type<tc>, window_params = [{transform_indices = @transform_0, window_bounds = array<i64: 8, 32>}, {pipeline_mode = #tpu.pipeline_mode<synchronous>, transform_indices = @transform_1, window_bounds = array<i64: 32, 128>}, {pipeline_mode = #tpu.pipeline_mode<synchronous>, transform_indices = @transform_2, window_bounds = array<i64: 1, 128>}, {transform_indices = @transform_3, window_bounds = array<i64: 8, 128>}]} {
    %c0 = arith.constant 0 : index
    %c0_0 = arith.constant 0 : index
    %0 = vector.load %arg1[%c0, %c0_0] : memref<8x32xf32, #tpu.memory_space<vmem>>, vector<8x32xf32>
    %c0_1 = arith.constant 0 : index
    %c0_2 = arith.constant 0 : index
    %1 = vector.load %arg2[%c0_1, %c0_2] : memref<32x128xf32, #tpu.memory_space<vmem>>, vector<32x128xf32>
    %cst = arith.constant dense<0.000000e+00> : vector<8x128xf32>
    %2 = tpu.matmul %0, %1, %cst {dimension_numbers = #tpu.dot_dimension_numbers<[1], [0], [0], [1], [0, 0, 1, 1], [], []>} : vector<8x32xf32>, vector<32x128xf32>, vector<8x128xf32> -> vector<8x128xf32>
    %c0_3 = arith.constant 0 : index
    %c0_4 = arith.constant 0 : index
    %3 = vector.load %arg3[%c0_3, %c0_4] : memref<1x128xf32, #tpu.memory_space<vmem>>, vector<1x128xf32>
    %4 = vector.broadcast %3 : vector<1x128xf32> to vector<8x128xf32>
    %5 = arith.addf %2, %4 : vector<8x128xf32>
    %cst_5 = arith.constant 5.000000e-01 : f32
    %6 = vector.broadcast %cst_5 : f32 to vector<8x128xf32>
    %7 = arith.mulf %5, %6 : vector<8x128xf32>
    %cst_6 = arith.constant 0.707106769 : f32
    %8 = vector.broadcast %cst_6 : f32 to vector<8x128xf32>
    %9 = arith.mulf %5, %8 : vector<8x128xf32>
    %10 = math.erf %9 : vector<8x128xf32>
    %cst_7 = arith.constant 1.000000e+00 : f32
    %11 = vector.broadcast %cst_7 : f32 to vector<8x128xf32>
    %12 = arith.addf %11, %10 : vector<8x128xf32>
    %13 = arith.mulf %7, %12 : vector<8x128xf32>
    %14 = arith.mulf %13, %13 : vector<8x128xf32>
    %cst_8 = arith.constant dense<0.000000e+00> : vector<8xf32>
    %15 = vector.multi_reduction <add>, %14, %cst_8 [1] : vector<8x128xf32> to vector<8xf32>
    %16 = vector.shape_cast %15 : vector<8xf32> to vector<8x1xf32>
    %cst_9 = arith.constant 1.000000e-24 : f32
    %17 = vector.broadcast %cst_9 : f32 to vector<8x1xf32>
    %18 = arith.maximumf %16, %17 : vector<8x1xf32>
    %19 = math.rsqrt %18 : vector<8x1xf32>
    %20 = vector.broadcast %19 : vector<8x1xf32> to vector<8x128xf32>
    %21 = arith.mulf %13, %20 : vector<8x128xf32>
    %c0_10 = arith.constant 0 : index
    %c0_11 = arith.constant 0 : index
    %22 = vector.load %arg4[%c0_10, %c0_11] : memref<8x128xf32, #tpu.memory_space<vmem>>, vector<8x128xf32>
    tpu.vector_store %arg4[%c0_10, %c0_11], %21 {strides = array<i32>} : memref<8x128xf32, #tpu.memory_space<vmem>>, vector<8x128xf32>,
    return
  }
  func.func @transform_0(%arg0: i32) -> (i32, i32) {
    %c0_i32 = arith.constant 0 : i32
    %c0_i32_0 = arith.constant 0 : i32
    return %arg0, %c0_i32 : i32, i32
  }
  func.func @transform_1(%arg0: i32) -> (i32, i32) {
    %c0_i32 = arith.constant 0 : i32
    %c0_i32_0 = arith.constant 0 : i32
    %c0_i32_1 = arith.constant 0 : i32
    return %c0_i32, %c0_i32_0 : i32, i32
  }
  func.func @transform_2(%arg0: i32) -> (i32, i32) {
    %c0_i32 = arith.constant 0 : i32
    %c0_i32_0 = arith.constant 0 : i32
    %c0_i32_1 = arith.constant 0 : i32
    return %c0_i32, %c0_i32_0 : i32, i32
  }
  func.func @transform_3(%arg0: i32) -> (i32, i32) {
    %c0_i32 = arith.constant 0 : i32
    %c0_i32_0 = arith.constant 0 : i32
    return %arg0, %c0_i32 : i32, i32
  }
}

</mosaic_0001>

<llo_original>
// kernel: tpu_custom_call.1
$region0: #{tpu_custom_call.1}
  #allocation0 [shape = 'u32[]', space=smem, size = 0x4, offset = 0x4, fixed_abs, tag = 'smem constant byte address 0x4 - core index']
  #allocation1 [shape = 'u32[144,128]{1,0:T(1,128)}', space=vmem, size = 0x12000, scoped, tag = 'internal scratch']
  %s0 = inlined_call_operand.hbm [shape: f32[8,32], index: 0, kind: input, shape index: {}]
  %s1 = inlined_call_operand.hbm [shape: f32[32,128], index: 1, kind: input, shape index: {}]
  %s2 = inlined_call_operand.vmem [shape: f32[1,128], index: 2, kind: input, shape index: {}]
  %s3 = inlined_call_operand.hbm [shape: f32[8,128], index: 3, kind: output, shape index: {}]
  %s4 = sld [smem:[#allocation0]]
  $region30: #{tpu_custom_call.1} parent=0
    _
  %s6 = ssub.s32 1, %s4
  %s7 = scalar_select 0, %s6, %s4
  $region1: #{tpu_custom_call.1} parent=0
    #allocation2 [shape = 'u8[4096]{0}', space=vmem, size = 0x1000, scoped, tag = 'input window, operand 0, single buffered']
    #allocation3 [shape = 's32[1]{0}', space=sflag, size = 0x4, scoped, tag = 'scoped memory for tpu_custom_call.1']
    #allocation4 [shape = 's32[1]{0}', space=sflag, size = 0x4, scoped, tag = 'scoped memory for tpu_custom_call.1']
    #allocation5 [shape = 'u8[16384]{0}', space=vmem, size = 0x4000, scoped, tag = 'input window, operand 1, single buffered']
    #allocation6 [shape = 's32[1]{0}', space=sflag, size = 0x4, scoped, tag = 'scoped memory for tpu_custom_call.1']
    #allocation7 [shape = 'u8[4096]{0}', space=vmem, size = 0x1000, scoped, tag = 'output window, operand 0, single buffered']
    %8 = vsyncpa [#allocation3], 0
    %9 = vsyncpa [#allocation6], 0
    %10 = vsyncpa [#allocation4], 0
    // Predicated region
    $region2: #{tpu_custom_call.1} parent=1 // pred_check
      _
    $region3: #{tpu_custom_call.1} parent=1 // pred_check_branch
      %12 = sbr.rel (0) target = $region5
    $region4: #{tpu_custom_call.1} parent=1 // pred_region
      %s14 = ssub.s32 128, 128
      %15 = vsyncadd [#allocation3], %s14
      %s17 = sshll.u32 [#allocation2], 4
      %s18 = int_to_ptr.vmem [resolvable:$true] %s17
      %20 = dma.hbm_to_vmem [thread:$0]  %s0, 128, %s18, [#allocation3]
    $region5: #{tpu_custom_call.1} parent=1 // pred_fallthru
      _
    // Predicated region
    $region6: #{tpu_custom_call.1} parent=1 // pred_check
      _
    $region7: #{tpu_custom_call.1} parent=1 // pred_check_branch
      %22 = sbr.rel (0) target = $region9
    $region8: #{tpu_custom_call.1} parent=1 // pred_region
      %s24 = ssub.s32 512, 512
      %25 = vsyncadd [#allocation6], %s24
      %s26 = sshll.u32 [#allocation5], 4
      %s27 = int_to_ptr.vmem [resolvable:$true] %s26
      %32 = dma.hbm_to_vmem [thread:$0]  %s1, 512, %s27, [#allocation6], 128, 128, 8
    $region9: #{tpu_custom_call.1} parent=1 // pred_fallthru
      _
    // Predicated region
    $region10: #{tpu_custom_call.1} parent=1 // pred_check
      _
    $region11: #{tpu_custom_call.1} parent=1 // pred_check_branch
      %34 = sbr.rel (0) target = $region13
    $region12: #{tpu_custom_call.1} parent=1 // pred_region
      _
    $region13: #{tpu_custom_call.1} parent=1 // pred_fallthru
      _
    // Predicated region
    $region14: #{tpu_custom_call.1} parent=1 // pred_check
      _
    $region15: #{tpu_custom_call.1} parent=1 // pred_check_branch
      %36 = sbr.rel (0) target = $region17
    $region16: #{tpu_custom_call.1} parent=1 // pred_region
      %37 = dma.done [#allocation3], 128
    $region17: #{tpu_custom_call.1} parent=1 // pred_fallthru
      _
    // Predicated region
    $region18: #{tpu_custom_call.1} parent=1 // pred_check
      _
    $region19: #{tpu_custom_call.1} parent=1 // pred_check_branch
      %39 = sbr.rel (0) target = $region21
    $region20: #{tpu_custom_call.1} parent=1 // pred_region
      %40 = dma.done [#allocation6], 512
    $region21: #{tpu_custom_call.1} parent=1 // pred_fallthru
      _
    %v41 = vld [vmem:[#allocation2] sm:$0xff]
    %v42 = vld [vmem:[#allocation5] sm:$0xff]
    %v43 = vld [vmem:[#allocation5 + $0x8] sm:$0xff]
    %v44 = vld [vmem:[#allocation5 + $0x10] sm:$0xff]
    %v45 = vld [vmem:[#allocation5 + $0x18] sm:$0xff]
    %v46 = vld [vmem:[%s2] sm:$0x1]
    %v48 = vlaneseq
    %v49 = vshrl.u32 %v48, 7
    %v50 = vsub.s32 0, %v49
    %v51 = vrot.slane %v46, %v50
    %vm53 = vcmask 261120
    %v55 = vsel %vm53, %v41, 0
    %57 = vmatprep.subr.mxu0 0.0
    %58 = vmatpush1.msra.mxu0 0.0
    %59 = vmatprep.subr.mxu0 0.0
    %60 = vmatpush1.msra.mxu0 0.0
    %61 = vmatprep.subr.mxu0 0.0
    %62 = vmatpush1.msra.mxu0 0.0
    %63 = vmatprep.subr.mxu0 0.0
    %64 = vmatpush1.msra.mxu0 0.0
    %65 = vmatprep.subr.mxu0 0.0
    %66 = vmatpush1.msra.mxu0 0.0
    %67 = vmatprep.subr.mxu0 0.0
    %68 = vmatpush1.msra.mxu0 0.0
    %69 = vmatprep.subr.mxu0 0.0
    %70 = vmatpush1.msra.mxu0 0.0
    %71 = vmatprep.subr.mxu0 0.0
    %72 = vmatpush1.msra.mxu0 0.0
    %73 = vmatprep.subr.mxu0 0.0
    %74 = vmatpush1.msra.mxu0 0.0
    %75 = vmatprep.subr.mxu0 0.0
    %76 = vmatpush1.msra.mxu0 0.0
    %77 = vmatprep.subr.mxu0 0.0
    %78 = vmatpush1.msra.mxu0 0.0
    %79 = vmatprep.subr.mxu0 0.0
    %80 = vmatpush1.msra.mxu0 0.0
    %81 = vmatprep.subr.mxu0 0.0
    %82 = vmatpush1.msra.mxu0 %v45
    %83 = vmatprep.subr.mxu0 0.0
    %84 = vmatpush1.msra.mxu0 %v44
    %85 = vmatprep.subr.mxu0 0.0
    %86 = vmatpush1.msra.mxu0 %v43
    %87 = vmatprep.subr.mxu0 0.0
    %88 = vmatpush1.msra.mxu0 %v42
    %89 = vmatprep.subr.mxu0 0.0
    %90 = vmatpush2.msra.mxu0 0.0
    %91 = vmatprep.subr.mxu0 0.0
    %92 = vmatpush2.msra.mxu0 0.0
    %93 = vmatprep.subr.mxu0 0.0
    %94 = vmatpush2.msra.mxu0 0.0
    %95 = vmatprep.subr.mxu0 0.0
    %96 = vmatpush2.msra.mxu0 0.0
    %97 = vmatprep.subr.mxu0 0.0
    %98 = vmatpush2.msra.mxu0 0.0
    %99 = vmatprep.subr.mxu0 0.0
    %100 = vmatpush2.msra.mxu0 0.0
    %101 = vmatprep.subr.mxu0 0.0
    %102 = vmatpush2.msra.mxu0 0.0
    %103 = vmatprep.subr.mxu0 0.0
    %104 = vmatpush2.msra.mxu0 0.0
    %105 = vmatprep.subr.mxu0 0.0
    %106 = vmatpush2.msra.mxu0 0.0
    %107 = vmatprep.subr.mxu0 0.0
    %108 = vmatpush2.msra.mxu0 0.0
    %109 = vmatprep.subr.mxu0 0.0
    %110 = vmatpush2.msra.mxu0 0.0
    %111 = vmatprep.subr.mxu0 0.0
    %112 = vmatpush2.msra.mxu0 0.0
    %113 = vmatprep.subr.mxu0 0.0
    %114 = vmatpush2.msra.mxu0 0.0
    %115 = vmatprep.subr.mxu0 0.0
    %116 = vmatpush2.msra.mxu0 0.0
    %117 = vmatprep.subr.mxu0 0.0
    %118 = vmatpush2.msra.mxu0 0.0
    %119 = vmatprep.subr.mxu0 0.0
    %120 = vmatpush2.msra.mxu0 0.0
    %121 = vmatprep.mubr.f32.mxu0 0.0
    %122 = vmatmul.mubr.f32.gmra.mxu0 %v55
    %v123 = vpop.f32.mrf.mxu0
    %v124 = vadd.f32 %v51, %v123
    %v125 = vpop.f32.mrf.mxu0
    %126 = vdwg.mxu0
    %v127 = vmul.f32 %v124, 0.5
    %v128 = vmul.f32 %v124, 0.70710677
    %v129 = verf.f32.pop %v128
    %v130 = vadd.f32 %v129, 1.0
    %v131 = vmul.f32 %v127, %v130
    %v132 = vmul.f32 %v131, %v131
    %133 = vadd.xlane.f32.xlu0 %v132
    %v134 = vpop.xlane.xlu0 %133
    %v135 = vmax.f32 %v134, 1e-24
    %v136 = vrsqrt.pop %v135
    %v137 = vmul.f32 %v131, %v136
    %138 = vst [vmem:[#allocation7] sm:$0xff] %v137
    // Predicated region
    $region22: #{tpu_custom_call.1} parent=1 // pred_check
      _
    $region23: #{tpu_custom_call.1} parent=1 // pred_check_branch
      %140 = sbr.rel (0) target = $region25
    $region24: #{tpu_custom_call.1} parent=1 // pred_region
      %s142 = ssub.s32 128, 128
      %143 = vsyncadd [#allocation4], %s142
      %s145 = sshll.u32 [#allocation7], 4
      %s146 = int_to_ptr.vmem [resolvable:$true] %s145
      %148 = dma.vmem_to_hbm [thread:$0]  %s146, 128, %s3, [#allocation4]
    $region25: #{tpu_custom_call.1} parent=1 // pred_fallthru
      _
    // Predicated region
    $region26: #{tpu_custom_call.1} parent=1 // pred_check
      _
    $region27: #{tpu_custom_call.1} parent=1 // pred_check_branch
      %150 = sbr.rel (0) target = $region29
    $region28: #{tpu_custom_call.1} parent=1 // pred_region
      %151 = dma.done [#allocation4], 128
    $region29: #{tpu_custom_call.1} parent=1 // pred_fallthru
      _
    %152 = vsyncpa [#allocation3], 1
    %153 = vsyncpa [#allocation6], 1
    %154 = vsyncpa [#allocation4], 1

// kernel: tpu_custom_call.1
$region0: #{tpu_custom_call.1}
  #allocation0 [shape = 'u32[]', space=smem, size = 0x4, offset = 0x4, fixed_abs, tag = 'smem constant byte address 0x4 - core index']
  #allocation1 [shape = 'u32[144,128]{1,0:T(1,128)}', space=vmem, size = 0x12000, scoped, tag = 'internal scratch']
  %s0 = inlined_call_operand.hbm [shape: f32[8,32], index: 0, kind: input, shape index: {}]
  %s1 = inlined_call_operand.hbm [shape: f32[32,128], index: 1, kind: input, shape index: {}]
  %s2 = inlined_call_operand.vmem [shape: f32[1,128], index: 2, kind: input, shape index: {}]
  %s3 = inlined_call_operand.hbm [shape: f32[8,128], index: 3, kind: output, shape index: {}]
  %s4 = sld [smem:[#allocation0]]
  $region30: #{tpu_custom_call.1} parent=0
    _
  %s6 = ssub.s32 1, %s4
  %s7 = scalar_select 0, %s6, %s4
  $region1: #{tpu_custom_call.1} parent=0
    #allocation2 [shape = 'u8[4096]{0}', space=vmem, size = 0x1000, scoped, tag = 'input window, operand 0, single buffered']
    #allocation3 [shape = 's32[1]{0}', space=sflag, size = 0x4, scoped, tag = 'scoped memory for tpu_custom_call.1']
    #allocation4 [shape = 's32[1]{0}', space=sflag, size = 0x4, scoped, tag = 'scoped memory for tpu_custom_call.1']
    #allocation5 [shape = 'u8[16384]{0}', space=vmem, size = 0x4000, scoped, tag = 'input window, operand 1, single buffered']
    #allocation6 [shape = 's32[1]{0}', space=sflag, size = 0x4, scoped, tag = 'scoped memory for tpu_custom_call.1']
    #allocation7 [shape = 'u8[4096]{0}', space=vmem, size = 0x1000, scoped, tag = 'output window, operand 0, single buffered']
    %8 = vsyncpa [#allocation3], 0
    %9 = vsyncpa [#allocation6], 0
    %10 = vsyncpa [#allocation4], 0
    // Predicated region
    $region2: #{tpu_custom_call.1} parent=1 // pred_check
      _
    $region3: #{tpu_custom_call.1} parent=1 // pred_check_branch
      %12 = sbr.rel (0) target = $region5
    $region4: #{tpu_custom_call.1} parent=1 // pred_region
      %s14 = ssub.s32 128, 128
      %15 = vsyncadd [#allocation3], %s14
      %s17 = sshll.u32 [#allocation2], 4
      %s18 = int_to_ptr.vmem [resolvable:$true] %s17
      %20 = dma.hbm_to_vmem [thread:$0]  %s0, 128, %s18, [#allocation3]
    $region5: #{tpu_custom_call.1} parent=1 // pred_fallthru
      _
    // Predicated region
    $region6: #{tpu_custom_call.1} parent=1 // pred_check
      _
    $region7: #{tpu_custom_call.1} parent=1 // pred_check_branch
      %22 = sbr.rel (0) target = $region9
    $region8: #{tpu_custom_call.1} parent=1 // pred_region
      %s24 = ssub.s32 512, 512
      %25 = vsyncadd [#allocation6], %s24
      %s26 = sshll.u32 [#allocation5], 4
      %s27 = int_to_ptr.vmem [resolvable:$true] %s26
      %32 = dma.hbm_to_vmem [thread:$0]  %s1, 512, %s27, [#allocation6], 128, 128, 8
    $region9: #{tpu_custom_call.1} parent=1 // pred_fallthru
      _
    // Predicated region
    $region10: #{tpu_custom_call.1} parent=1 // pred_check
      _
    $region11: #{tpu_custom_call.1} parent=1 // pred_check_branch
      %34 = sbr.rel (0) target = $region13
    $region12: #{tpu_custom_call.1} parent=1 // pred_region
      _
    $region13: #{tpu_custom_call.1} parent=1 // pred_fallthru
      _
    // Predicated region
    $region14: #{tpu_custom_call.1} parent=1 // pred_check
      _
    $region15: #{tpu_custom_call.1} parent=1 // pred_check_branch
      %36 = sbr.rel (0) target = $region17
    $region16: #{tpu_custom_call.1} parent=1 // pred_region
      %37 = dma.done [#allocation3], 128
    $region17: #{tpu_custom_call.1} parent=1 // pred_fallthru
      _
    // Predicated region
    $region18: #{tpu_custom_call.1} parent=1 // pred_check
      _
    $region19: #{tpu_custom_call.1} parent=1 // pred_check_branch
      %39 = sbr.rel (0) target = $region21
    $region20: #{tpu_custom_call.1} parent=1 // pred_region
      %40 = dma.done [#allocation6], 512
    $region21: #{tpu_custom_call.1} parent=1 // pred_fallthru
      _
    %v41 = vld [vmem:[#allocation2] sm:$0xff]
    %v42 = vld [vmem:[#allocation5] sm:$0xff]
    %v43 = vld [vmem:[#allocation5 + $0x8] sm:$0xff]
    %v44 = vld [vmem:[#allocation5 + $0x10] sm:$0xff]
    %v45 = vld [vmem:[#allocation5 + $0x18] sm:$0xff]
    %v46 = vld [vmem:[%s2] sm:$0x1]
    %v48 = vlaneseq
    %v49 = vshrl.u32 %v48, 7
    %v50 = vsub.s32 0, %v49
    %v51 = vrot.slane %v46, %v50
    %vm53 = vcmask 261120
    %v55 = vsel %vm53, %v41, 0
    %57 = vmatprep.subr.mxu0 0.0
    %58 = vmatpush1.msra.mxu0 0.0
    %59 = vmatprep.subr.mxu0 0.0
    %60 = vmatpush1.msra.mxu0 0.0
    %61 = vmatprep.subr.mxu0 0.0
    %62 = vmatpush1.msra.mxu0 0.0
    %63 = vmatprep.subr.mxu0 0.0
    %64 = vmatpush1.msra.mxu0 0.0
    %65 = vmatprep.subr.mxu0 0.0
    %66 = vmatpush1.msra.mxu0 0.0
    %67 = vmatprep.subr.mxu0 0.0
    %68 = vmatpush1.msra.mxu0 0.0
    %69 = vmatprep.subr.mxu0 0.0
    %70 = vmatpush1.msra.mxu0 0.0
    %71 = vmatprep.subr.mxu0 0.0
    %72 = vmatpush1.msra.mxu0 0.0
    %73 = vmatprep.subr.mxu0 0.0
    %74 = vmatpush1.msra.mxu0 0.0
    %75 = vmatprep.subr.mxu0 0.0
    %76 = vmatpush1.msra.mxu0 0.0
    %77 = vmatprep.subr.mxu0 0.0
    %78 = vmatpush1.msra.mxu0 0.0
    %79 = vmatprep.subr.mxu0 0.0
    %80 = vmatpush1.msra.mxu0 0.0
    %81 = vmatprep.subr.mxu0 0.0
    %82 = vmatpush1.msra.mxu0 %v45
    %83 = vmatprep.subr.mxu0 0.0
    %84 = vmatpush1.msra.mxu0 %v44
    %85 = vmatprep.subr.mxu0 0.0
    %86 = vmatpush1.msra.mxu0 %v43
    %87 = vmatprep.subr.mxu0 0.0
    %88 = vmatpush1.msra.mxu0 %v42
    %89 = vmatprep.subr.mxu0 0.0
    %90 = vmatpush2.msra.mxu0 0.0
    %91 = vmatprep.subr.mxu0 0.0
    %92 = vmatpush2.msra.mxu0 0.0
    %93 = vmatprep.subr.mxu0 0.0
    %94 = vmatpush2.msra.mxu0 0.0
    %95 = vmatprep.subr.mxu0 0.0
    %96 = vmatpush2.msra.mxu0 0.0
    %97 = vmatprep.subr.mxu0 0.0
    %98 = vmatpush2.msra.mxu0 0.0
    %99 = vmatprep.subr.mxu0 0.0
    %100 = vmatpush2.msra.mxu0 0.0
    %101 = vmatprep.subr.mxu0 0.0
    %102 = vmatpush2.msra.mxu0 0.0
    %103 = vmatprep.subr.mxu0 0.0
    %104 = vmatpush2.msra.mxu0 0.0
    %105 = vmatprep.subr.mxu0 0.0
    %106 = vmatpush2.msra.mxu0 0.0
    %107 = vmatprep.subr.mxu0 0.0
    %108 = vmatpush2.msra.mxu0 0.0
    %109 = vmatprep.subr.mxu0 0.0
    %110 = vmatpush2.msra.mxu0 0.0
    %111 = vmatprep.subr.mxu0 0.0
    %112 = vmatpush2.msra.mxu0 0.0
    %113 = vmatprep.subr.mxu0 0.0
    %114 = vmatpush2.msra.mxu0 0.0
    %115 = vmatprep.subr.mxu0 0.0
    %116 = vmatpush2.msra.mxu0 0.0
    %117 = vmatprep.subr.mxu0 0.0
    %118 = vmatpush2.msra.mxu0 0.0
    %119 = vmatprep.subr.mxu0 0.0
    %120 = vmatpush2.msra.mxu0 0.0
    %121 = vmatprep.mubr.f32.mxu0 0.0
    %122 = vmatmul.mubr.f32.gmra.mxu0 %v55
    %v123 = vpop.f32.mrf.mxu0
    %v124 = vadd.f32 %v51, %v123
    %v125 = vpop.f32.mrf.mxu0
    %126 = vdwg.mxu0
    %v127 = vmul.f32 %v124, 0.5
    %v128 = vmul.f32 %v124, 0.70710677
    %v129 = verf.f32.pop %v128
    %v130 = vadd.f32 %v129, 1.0
    %v131 = vmul.f32 %v127, %v130
    %v132 = vmul.f32 %v131, %v131
    %133 = vadd.xlane.f32.xlu0 %v132
    %v134 = vpop.xlane.xlu0 %133
    %v135 = vmax.f32 %v134, 1e-24
    %v136 = vrsqrt.pop %v135
    %v137 = vmul.f32 %v131, %v136
    %138 = vst [vmem:[#allocation7] sm:$0xff] %v137
    // Predicated region
    $region22: #{tpu_custom_call.1} parent=1 // pred_check
      _
    $region23: #{tpu_custom_call.1} parent=1 // pred_check_branch
      %140 = sbr.rel (0) target = $region25
    $region24: #{tpu_custom_call.1} parent=1 // pred_region
      %s142 = ssub.s32 128, 128
      %143 = vsyncadd [#allocation4], %s142
      %s145 = sshll.u32 [#allocation7], 4
      %s146 = int_to_ptr.vmem [resolvable:$true] %s145
      %148 = dma.vmem_to_hbm [thread:$0]  %s146, 128, %s3, [#allocation4]
    $region25: #{tpu_custom_call.1} parent=1 // pred_fallthru
      _
    // Predicated region
    $region26: #{tpu_custom_call.1} parent=1 // pred_check
      _
    $region27: #{tpu_custom_call.1} parent=1 // pred_check_branch
      %150 = sbr.rel (0) target = $region29
    $region28: #{tpu_custom_call.1} parent=1 // pred_region
      %151 = dma.done [#allocation4], 128
    $region29: #{tpu_custom_call.1} parent=1 // pred_fallthru
      _
    %152 = vsyncpa [#allocation3], 1
    %153 = vsyncpa [#allocation6], 1
    %154 = vsyncpa [#allocation4], 1

</llo_original>
